<compile_context>
chip_gen: v7x
topology: tpu7x:2x2x1
jax: 0.10.0
libtpu: 0.0.40
codegen_flags: <defaults>
</compile_context>

<pallas_src>
import jax
import jax.numpy as jnp
from jax import lax
import numpy as np
from jax.experimental import pallas as pl
from jax.experimental.pallas import tpu as pltpu

_HIGH = lax.Precision.HIGHEST  # used only by the pure-JAX f32 reference


# --------------------------------------------------------------------------- kernels
def _node_proj_kernel(h_ref, w_ref, b_ref, a1_ref, gsrc_ref, gdst_ref):
    """hcat = h @ [W_A1|W_B1|W_A2|W_B2|W_A3] + b -> A1h (f32), [B1h|A2h], [B2h|A3h] (bf16)."""
    C = a1_ref.shape[1]
    hcat = jnp.dot(h_ref[...], w_ref[...],
                   preferred_element_type=jnp.float32) + b_ref[...]
    a1_ref[...] = hcat[:, :C]
    gsrc_ref[...] = hcat[:, C:3 * C].astype(jnp.bfloat16)       # [B1h | A2h]
    gdst_ref[...] = hcat[:, 3 * C:5 * C].astype(jnp.bfloat16)   # [B2h | A3h]


def _edge_kernel(e_ref, sidx_ref, didx_ref, gsrc_ref, gdst_ref, wb3_ref, bb3_ref,
                 eji_ref, pay_ref):
    """Edge stage: in-VMEM one-hot gather (bf16 MXU), B3 projection, gating payload."""
    C = e_ref.shape[1]
    TE = e_ref.shape[0]
    Np = gsrc_ref.shape[0]

    # Selection masks built from the int32 index vectors (no one-hot ever hits HBM).
    # Padded edges carry index -1 -> all-zero mask rows -> zero gathered features.
    node_ids = lax.broadcasted_iota(jnp.int32, (TE, Np), 1)
    s_mask = jnp.where(node_ids == sidx_ref[...], 1.0, 0.0).astype(jnp.bfloat16)
    d_mask = jnp.where(node_ids == didx_ref[...], 1.0, 0.0).astype(jnp.bfloat16)

    # Single-pass bf16 x bf16 -> f32 gather matmuls on the MXU.
    src_feat = jnp.dot(s_mask, gsrc_ref[...], preferred_element_type=jnp.float32)
    dst_feat = jnp.dot(d_mask, gdst_ref[...], preferred_element_type=jnp.float32)
    b1_src, a2_src = src_feat[:, :C], src_feat[:, C:]
    b2_dst, a3_dst = dst_feat[:, :C], dst_feat[:, C:]

    e = e_ref[...]
    b3e = jnp.dot(e, wb3_ref[...], preferred_element_type=jnp.float32) + bb3_ref[...]

    # Forward edge feature == backward edge feature for the symmetric layer.
    e_ji = jnp.maximum(b1_src + b2_dst + b3e, 0.0) + e           # relu + residual
    sigma = jax.nn.sigmoid(e_ji)

    eji_ref[...] = e_ji
    # Lane-dense (TE, 4C) payload: [A2h_src*sigma | sigma | A3h_dst*sigma | sigma]
    pay_ref[...] = jnp.concatenate(
        [a2_src * sigma, sigma, a3_dst * sigma, sigma], axis=-1).astype(jnp.bfloat16)


def _node_update_kernel(didx_ref, sidx_ref, p_ref, a1_ref, hin_ref, g_ref, b_ref,
                        out_ref, acc_ref):
    """Scatter-add over edge tiles (reduction grid axis) + LayerNorm / relu / residual."""
    i = pl.program_id(0)
    k = pl.program_id(1)

    @pl.when(k == 0)
    def _init():
        acc_ref[...] = jnp.zeros_like(acc_ref)

    TN = acc_ref.shape[0]
    TE = p_ref.shape[0]
    C = a1_ref.shape[1]

    # (TN, TE) scatter masks built in-VMEM; contracting the LAST lhs dim keeps the MXU
    # feed natural (no per-tile transpose). Padded edges (index -1) never match.
    node_ids = i * TN + lax.broadcasted_iota(jnp.int32, (TN, TE), 0)
    d_mask = jnp.where(node_ids == didx_ref[...], 1.0, 0.0).astype(jnp.bfloat16)
    s_mask = jnp.where(node_ids == sidx_ref[...], 1.0, 0.0).astype(jnp.bfloat16)

    p = p_ref[...]                                              # (TE, 4C) bf16
    fwd = jnp.dot(d_mask, p[:, :2 * C], preferred_element_type=jnp.float32)
    bwd = jnp.dot(s_mask, p[:, 2 * C:], preferred_element_type=jnp.float32)
    acc_ref[...] += jnp.concatenate([fwd, bwd], axis=-1)        # (TN, 4C)

    @pl.when(k == pl.num_programs(1) - 1)
    def _finalize():
        acc = acc_ref[...]
        h_fwd = acc[:, 0:C] * pl.reciprocal(acc[:, C:2 * C] + 1e-6, approx=True)
        h_bwd = acc[:, 2 * C:3 * C] * pl.reciprocal(acc[:, 3 * C:4 * C] + 1e-6,
                                                    approx=True)
        hn = a1_ref[...] + h_fwd + h_bwd
        # bn_h == LayerNorm(out_channels), PyTorch default eps=1e-5.
        mu = jnp.mean(hn, axis=-1, keepdims=True)
        xc = hn - mu
        var = jnp.mean(xc * xc, axis=-1, keepdims=True)
        hn = xc * lax.rsqrt(var + 1e-5) * g_ref[...] + b_ref[...]
        # relu -> residual (dropout p=0.0 is the identity).
        out_ref[...] = jnp.maximum(hn, 0.0) + hin_ref[...]


# --------------------------------------------------------------------------- wrapper
def _round_up(x, m):
    return ((x + m - 1) // m) * m


def sym_gated_gcn_pallas(h, e, src, dst, params, *, node_tile=256, edge_tile=256):
    N, C = h.shape
    E = e.shape[0]

    # ---- tile / pad sizes -----------------------------------------------------------
    if N <= node_tile:
        Np = _round_up(N, 8)
        TN = Np
    else:
        assert node_tile % 8 == 0, "node_tile must be a multiple of 8"
        Np = _round_up(N, node_tile)
        TN = node_tile
    if E <= edge_tile:
        Ep = _round_up(E, 8)
        TE = Ep
    else:
        # TE is the last dim of the (1, TE) index blocks -> multiple of 128 when tiled.
        assert edge_tile % 128 == 0, "edge_tile must be a multiple of 128 when tiling E"
        Ep = _round_up(E, edge_tile)
        TE = edge_tile

    hp = jnp.zeros((Np, C), jnp.float32).at[:N].set(h.astype(jnp.float32))
    ep = jnp.zeros((Ep, C), jnp.float32).at[:E].set(e.astype(jnp.float32))
    # Padded edges get index -1 -> never match any node id -> zero gather rows and zero
    # scatter contributions (no extra masking needed anywhere).
    src_p = jnp.full((Ep,), -1, jnp.int32).at[:E].set(src.astype(jnp.int32))
    dst_p = jnp.full((Ep,), -1, jnp.int32).at[:E].set(dst.astype(jnp.int32))
    src_col, dst_col = src_p[:, None], dst_p[:, None]      # (Ep, 1) for the edge kernel
    src_row, dst_row = src_p[None, :], dst_p[None, :]      # (1, Ep) for the scatter kernel

    # Fused node-projection weights, columns ordered [A1 | B1 | A2 | B2 | A3] so the
    # kernel's output slices are contiguous (no wrapper concatenates / extra HBM copies).
    Wn = jnp.concatenate([params["W_A1"].T, params["W_B1"].T, params["W_A2"].T,
                          params["W_B2"].T, params["W_A3"].T], axis=1)       # (C, 5C)
    bn = jnp.concatenate([params["b_A1"], params["b_B1"], params["b_A2"],
                          params["b_B2"], params["b_A3"]])[None, :]          # (1, 5C)
    Wb3 = params["W_B3"].T                                                    # (C, C)
    bb3 = params["b_B3"][None, :]
    gamma = params["gamma_h"][None, :]
    beta = params["beta_h"][None, :]

    vmem_cap = 64 * 1024 * 1024   # explicit scoped-VMEM budget for the bigger kernels

    # ---- kernel A: fused node projections ---------------------------------------------
    a1h, gsrc, gdst = pl.pallas_call(
        _node_proj_kernel,
        out_shape=(jax.ShapeDtypeStruct((Np, C), jnp.float32),
                   jax.ShapeDtypeStruct((Np, 2 * C), jnp.bfloat16),
                   jax.ShapeDtypeStruct((Np, 2 * C), jnp.bfloat16)),
        grid=(Np // TN,),
        in_specs=[pl.BlockSpec((TN, C), lambda i: (i, 0)),
                  pl.BlockSpec((C, 5 * C), lambda i: (0, 0)),
                  pl.BlockSpec((1, 5 * C), lambda i: (0, 0))],
        out_specs=(pl.BlockSpec((TN, C), lambda i: (i, 0)),
                   pl.BlockSpec((TN, 2 * C), lambda i: (i, 0)),
                   pl.BlockSpec((TN, 2 * C), lambda i: (i, 0))),
        compiler_params=pltpu.CompilerParams(dimension_semantics=("parallel",)),
    )(hp, Wn, bn)

    # ---- kernel B: edge stage (in-VMEM gather + gating payload) -------------------------
    e_ji_p, payload = pl.pallas_call(
        _edge_kernel,
        out_shape=(jax.ShapeDtypeStruct((Ep, C), jnp.float32),
                   jax.ShapeDtypeStruct((Ep, 4 * C), jnp.bfloat16)),
        grid=(Ep // TE,),
        in_specs=[pl.BlockSpec((TE, C), lambda j: (j, 0)),        # e tile
                  pl.BlockSpec((TE, 1), lambda j: (j, 0)),        # src indices
                  pl.BlockSpec((TE, 1), lambda j: (j, 0)),        # dst indices
                  pl.BlockSpec((Np, 2 * C), lambda j: (0, 0)),    # [B1h | A2h] (resident)
                  pl.BlockSpec((Np, 2 * C), lambda j: (0, 0)),    # [B2h | A3h] (resident)
                  pl.BlockSpec((C, C), lambda j: (0, 0)),         # W_B3
                  pl.BlockSpec((1, C), lambda j: (0, 0))],        # b_B3
        out_specs=(pl.BlockSpec((TE, C), lambda j: (j, 0)),
                   pl.BlockSpec((TE, 4 * C), lambda j: (j, 0))),
        compiler_params=pltpu.CompilerParams(
            dimension_semantics=("parallel",), vmem_limit_bytes=vmem_cap),
    )(ep, src_col, dst_col, gsrc, gdst, Wb3, bb3)

    # ---- kernel C: scatter-add (edge-tile reduction) + node update ----------------------
    h_new_p = pl.pallas_call(
        _node_update_kernel,
        out_shape=jax.ShapeDtypeStruct((Np, C), jnp.float32),
        grid=(Np // TN, Ep // TE),
        in_specs=[pl.BlockSpec((1, TE), lambda i, k: (0, k)),      # dst indices
                  pl.BlockSpec((1, TE), lambda i, k: (0, k)),      # src indices
                  pl.BlockSpec((TE, 4 * C), lambda i, k: (k, 0)),  # payload (bf16)
                  pl.BlockSpec((TN, C), lambda i, k: (i, 0)),      # A1h
                  pl.BlockSpec((TN, C), lambda i, k: (i, 0)),      # h_in (residual)
                  pl.BlockSpec((1, C), lambda i, k: (0, 0)),       # gamma_h
                  pl.BlockSpec((1, C), lambda i, k: (0, 0))],      # beta_h
        out_specs=pl.BlockSpec((TN, C), lambda i, k: (i, 0)),
        scratch_shapes=[pltpu.VMEM((TN, 4 * C), jnp.float32)],
        compiler_params=pltpu.CompilerParams(
            dimension_semantics=("parallel", "arbitrary"),
            vmem_limit_bytes=vmem_cap),
    )(dst_row, src_row, payload, a1h, hp, gamma, beta)

    return h_new_p[:N], e_ji_p[:E]


# --------------------------------------------------------------------------- reference
def sym_gated_gcn_ref(h, e, src, dst, params):
    """Pure-JAX f32 mirror of SymGatedGCN.forward (batch_norm=False, residual=True)."""
    def lin(x, w, b):
        return jnp.dot(x, w.T, precision=_HIGH) + b

    def ln(x, g, b, eps=1e-5):
        mu = jnp.mean(x, axis=-1, keepdims=True)
        var = jnp.mean((x - mu) ** 2, axis=-1, keepdims=True)
        return (x - mu) / jnp.sqrt(var + eps) * g + b

    A1h = lin(h, params["W_A1"], params["b_A1"])
    A2h = lin(h, params["W_A2"], params["b_A2"])
    A3h = lin(h, params["W_A3"], params["b_A3"])
    B1h = lin(h, params["W_B1"], params["b_B1"])
    B2h = lin(h, params["W_B2"], params["b_B2"])
    B3e = lin(e, params["W_B3"], params["b_B3"])

    e_ji = jax.nn.relu(B1h[src] + B2h[dst] + B3e) + e
    sigma = jax.nn.sigmoid(e_ji)

    zeros = jnp.zeros_like(h)
    sum_f_h = zeros.at[dst].add(A2h[src] * sigma)
    sum_f = zeros.at[dst].add(sigma)
    h_fwd = sum_f_h / (sum_f + 1e-6)

    sum_b_h = zeros.at[src].add(A3h[dst] * sigma)
    sum_b = zeros.at[src].add(sigma)
    h_bwd = sum_b_h / (sum_b + 1e-6)

    h_new = A1h + h_fwd + h_bwd
    h_new = ln(h_new, params["gamma_h"], params["beta_h"])
    h_new = jax.nn.relu(h_new) + h
    # F.dropout(p=0.0) is the identity.
    return h_new, e_ji


def init_params(key, C):
    """nn.Linear-style init (uniform +/- 1/sqrt(fan_in)); LayerNorm gamma=1, beta=0."""
    names = ["A1", "A2", "A3", "B1", "B2", "B3"]
    params = {}
    bound = 1.0 / np.sqrt(C)
    keys = jax.random.split(key, 2 * len(names))
    for i, n in enumerate(names):
        params[f"W_{n}"] = jax.random.uniform(
            keys[2 * i], (C, C), jnp.float32, -bound, bound)
        params[f"b_{n}"] = jax.random.uniform(
            keys[2 * i + 1], (C,), jnp.float32, -bound, bound)
    # bn_h (LayerNorm) params; bn_e exists in the module but is unused in forward().
    params["gamma_h"] = jnp.ones((C,), jnp.float32)
    params["beta_h"] = jnp.zeros((C,), jnp.float32)
    return params


if __name__ == "__main__":
    # Small graph: 192 nodes, 384 directed edges, 32 channels.
    N, E, C = 192, 384, 32
    key = jax.random.PRNGKey(0)
    k_h, k_e, k_src, k_dst, k_p = jax.random.split(key, 5)

    h = jax.random.normal(k_h, (N, C), jnp.float32)
    e = jax.random.normal(k_e, (E, C), jnp.float32)
    src = jax.random.randint(k_src, (E,), 0, N, jnp.int32)
    dst = jax.random.randint(k_dst, (E,), 0, N, jnp.int32)
    params = init_params(k_p, C)

    # Tiles chosen so every parallel grid axis has >= 2 steps (node grid: 2, edge grid: 3)
    # and kernel C runs a genuine multi-step edge reduction.
    h_out, e_out = sym_gated_gcn_pallas(h, e, src, dst, params,
                                        node_tile=128, edge_tile=128)
    jax.block_until_ready((h_out, e_out))

    h_ref, e_ref = sym_gated_gcn_ref(h, e, src, dst, params)
    # Tolerance reflects the intentional single-pass bf16 MXU gather/scatter path
    # (bf16 feature/payload storage, ~2^-8 relative) plus the EUP approx reciprocal.
    np.testing.assert_allclose(np.asarray(h_out), np.asarray(h_ref), rtol=3e-2, atol=3e-2)
    np.testing.assert_allclose(np.asarray(e_out), np.asarray(e_ref), rtol=3e-2, atol=3e-2)

    print("KERNEL_OK")
</pallas_src>

<mosaic_0001>
module attributes {stable_mosaic.version = 11 : i64} {
  func.func @_node_proj_kernel(%arg0: i32, %arg1: memref<128x32xf32, #tpu.memory_space<vmem>>, %arg2: memref<32x160xf32, #tpu.memory_space<vmem>>, %arg3: memref<1x160xf32, #tpu.memory_space<vmem>>, %arg4: memref<128x32xf32, #tpu.memory_space<vmem>>, %arg5: memref<128x64xbf16, #tpu.memory_space<vmem>>, %arg6: memref<128x64xbf16, #tpu.memory_space<vmem>>) attributes {dimension_semantics = [#tpu.dimension_semantics<parallel>], iteration_bounds = array<i64: 2>, scalar_prefetch = 0 : i64, scratch_operands = 0 : i64, tpu.core_type = #tpu.core_type<tc>, window_params = [{transform_indices = @transform_0, window_bounds = array<i64: 128, 32>}, {pipeline_mode = #tpu.pipeline_mode<synchronous>, transform_indices = @transform_1, window_bounds = array<i64: 32, 160>}, {pipeline_mode = #tpu.pipeline_mode<synchronous>, transform_indices = @transform_2, window_bounds = array<i64: 1, 160>}, {transform_indices = @transform_3, window_bounds = array<i64: 128, 32>}, {transform_indices = @transform_4, window_bounds = array<i64: 128, 64>}, {transform_indices = @transform_5, window_bounds = array<i64: 128, 64>}]} {
    %c0 = arith.constant 0 : index
    %c0_0 = arith.constant 0 : index
    %0 = vector.load %arg1[%c0, %c0_0] : memref<128x32xf32, #tpu.memory_space<vmem>>, vector<128x32xf32>
    %c0_1 = arith.constant 0 : index
    %c0_2 = arith.constant 0 : index
    %1 = vector.load %arg2[%c0_1, %c0_2] : memref<32x160xf32, #tpu.memory_space<vmem>>, vector<32x160xf32>
    %cst = arith.constant dense<0.000000e+00> : vector<128x160xf32>
    %2 = tpu.matmul %0, %1, %cst {dimension_numbers = #tpu.dot_dimension_numbers<[1], [0], [0], [1], [0, 0, 1, 1], [], []>} : vector<128x32xf32>, vector<32x160xf32>, vector<128x160xf32> -> vector<128x160xf32>
    %c0_3 = arith.constant 0 : index
    %c0_4 = arith.constant 0 : index
    %3 = vector.load %arg3[%c0_3, %c0_4] : memref<1x160xf32, #tpu.memory_space<vmem>>, vector<1x160xf32>
    %4 = vector.broadcast %3 : vector<1x160xf32> to vector<128x160xf32>
    %5 = arith.addf %2, %4 : vector<128x160xf32>
    %6 = vector.extract_strided_slice %5 {offsets = [0, 0], sizes = [128, 32], strides = [1, 1]} : vector<128x160xf32> to vector<128x32xf32>
    %c0_5 = arith.constant 0 : index
    %c0_6 = arith.constant 0 : index
    %7 = vector.load %arg4[%c0_5, %c0_6] : memref<128x32xf32, #tpu.memory_space<vmem>>, vector<128x32xf32>
    tpu.vector_store %arg4[%c0_5, %c0_6], %6 {strides = array<i32>} : memref<128x32xf32, #tpu.memory_space<vmem>>, vector<128x32xf32>,
    %8 = vector.extract_strided_slice %5 {offsets = [0, 32], sizes = [128, 64], strides = [1, 1]} : vector<128x160xf32> to vector<128x64xf32>
    %9 = arith.truncf %8 : vector<128x64xf32> to vector<128x64xbf16>
    %c0_7 = arith.constant 0 : index
    %c0_8 = arith.constant 0 : index
    %10 = vector.load %arg5[%c0_7, %c0_8] : memref<128x64xbf16, #tpu.memory_space<vmem>>, vector<128x64xbf16>
    tpu.vector_store %arg5[%c0_7, %c0_8], %9 {strides = array<i32>} : memref<128x64xbf16, #tpu.memory_space<vmem>>, vector<128x64xbf16>,
    %11 = vector.extract_strided_slice %5 {offsets = [0, 96], sizes = [128, 64], strides = [1, 1]} : vector<128x160xf32> to vector<128x64xf32>
    %12 = arith.truncf %11 : vector<128x64xf32> to vector<128x64xbf16>
    %c0_9 = arith.constant 0 : index
    %c0_10 = arith.constant 0 : index
    %13 = vector.load %arg6[%c0_9, %c0_10] : memref<128x64xbf16, #tpu.memory_space<vmem>>, vector<128x64xbf16>
    tpu.vector_store %arg6[%c0_9, %c0_10], %12 {strides = array<i32>} : memref<128x64xbf16, #tpu.memory_space<vmem>>, vector<128x64xbf16>,
    return
  }
  func.func @transform_0(%arg0: i32) -> (i32, i32) {
    %c0_i32 = arith.constant 0 : i32
    %c0_i32_0 = arith.constant 0 : i32
    return %arg0, %c0_i32 : i32, i32
  }
  func.func @transform_1(%arg0: i32) -> (i32, i32) {
    %c0_i32 = arith.constant 0 : i32
    %c0_i32_0 = arith.constant 0 : i32
    %c0_i32_1 = arith.constant 0 : i32
    return %c0_i32, %c0_i32_0 : i32, i32
  }
  func.func @transform_2(%arg0: i32) -> (i32, i32) {
    %c0_i32 = arith.constant 0 : i32
    %c0_i32_0 = arith.constant 0 : i32
    %c0_i32_1 = arith.constant 0 : i32
    return %c0_i32, %c0_i32_0 : i32, i32
  }
  func.func @transform_3(%arg0: i32) -> (i32, i32) {
    %c0_i32 = arith.constant 0 : i32
    %c0_i32_0 = arith.constant 0 : i32
    return %arg0, %c0_i32 : i32, i32
  }
  func.func @transform_4(%arg0: i32) -> (i32, i32) {
    %c0_i32 = arith.constant 0 : i32
    %c0_i32_0 = arith.constant 0 : i32
    return %arg0, %c0_i32 : i32, i32
  }
  func.func @transform_5(%arg0: i32) -> (i32, i32) {
    %c0_i32 = arith.constant 0 : i32
    %c0_i32_0 = arith.constant 0 : i32
    return %arg0, %c0_i32 : i32, i32
  }
}

</mosaic_0001>

<llo_original>
// kernel: tpu_custom_call.1
$region0: #{tpu_custom_call.1}
  #allocation0 [shape = 'u32[]', space=smem, size = 0x4, offset = 0x4, fixed_abs, tag = 'smem constant byte address 0x4 - core index']
  #allocation1 [shape = 'u32[144,128]{1,0:T(1,128)}', space=vmem, size = 0x12000, scoped, tag = 'internal scratch']
  %s0 = inlined_call_operand.vmem [shape: f32[256,32], index: 0, kind: input, shape index: {}]
  %s1 = inlined_call_operand.vmem [shape: f32[32,160], index: 1, kind: input, shape index: {}]
  %s2 = inlined_call_operand.vmem [shape: f32[1,160], index: 2, kind: input, shape index: {}]
  %s3 = inlined_call_operand.vmem [shape: f32[256,32], index: 3, kind: output, shape index: {0}]
  %s4 = inlined_call_operand.vmem [shape: bf16[256,64], index: 4, kind: output, shape index: {1}]
  %s5 = inlined_call_operand.vmem [shape: bf16[256,64], index: 5, kind: output, shape index: {2}]
  %6 = xla_tuple %s3, %s4, %s5
  %s7 = sld [smem:[#allocation0]]
  $region61: #{tpu_custom_call.1} parent=0
    _
  %s9 = ssub.s32 1, %s7
  %s10 = scalar_select 0, %s9, %s7
  loop: start=0, step=1, limit=4
  $region2: #{tpu_custom_call.1} parent=0 // loop_pre_header
    _
  $region3: #{tpu_custom_call.1} parent=0 // loop_header
    %s12 = sphi 0, %s16
    %p13 = scmp.ge.s32.totalorder %s12, 4
    %s22 = sphi 0, %s24
    %s25 = sphi 0, %s22
    %s26 = sphi 0, %s25
    %s42 = sphi 0, %s26
    %s46 = sphi 0, %s46
    %s48 = sphi 0, %s46
    %s49 = sphi 0, %s48
    %s63 = sphi 0, %s49
    %s67 = sphi 0, %s67
    %s69 = sphi 0, %s67
    %s70 = sphi 0, %s69
    %s84 = sphi 0, %s70
    %s90 = sphi 0, %s92
    %s93 = sphi 0, %s90
    %s94 = sphi 0, %s93
    %s110 = sphi 0, %s94
    %s116 = sphi 0, %s118
    %s119 = sphi 0, %s116
    %s120 = sphi 0, %s119
    %s136 = sphi 0, %s120
    %s142 = sphi 0, %s144
    %s145 = sphi 0, %s142
    %s146 = sphi 0, %s145
    %s162 = sphi 0, %s146
  $region4: #{tpu_custom_call.1} parent=0 // loop_header_branch
    %15 = sbr.rel (%p13) target = $region8
  $region5: #{tpu_custom_call.1} parent=0 // loop_body
    %s17 = ssub.s32 %s12, 1
    %s18 = ssub.s32 %s12, 2
    %s19 = sadd.s32 %s12, 1
    %s20 = ssub.s32 %s12, %s19
    %p21 = scmp.eq.s32.totalorder %s20, 0
    %s23 = sadd.s32 %s22, 1
    %s24 = scalar_select %p21, %s22, %s23
    %p27 = pneg %p21
    %p28 = scmp.eq.s32.totalorder %s12, 1
    %p29 = por %p27, %p28
    %p30 = scmp.ne.s32.totalorder %s22, %s25
    %p31 = scmp.eq.s32.totalorder %s12, 0
    %p32 = por %p30, %p31
    %p33 = scmp.ne.s32.totalorder %s22, %s25
    %p34 = scmp.eq.s32.totalorder %s17, 1
    %p35 = por %p33, %p34
    %p36 = scmp.ne.s32.totalorder %s25, %s26
    %p37 = scmp.eq.s32.totalorder %s17, 0
    %p38 = por %p36, %p37
    %p39 = scmp.ne.s32.totalorder %s25, %s26
    %p40 = scmp.eq.s32.totalorder %s18, 1
    %p41 = por %p39, %p40
    %p43 = scmp.ne.s32.totalorder %s26, %s42
    %p44 = scmp.eq.s32.totalorder %s18, 0
    %p45 = por %p43, %p44
    %s47 = sadd.s32 %s46, 1
    %p50 = scmp.eq.s32.totalorder %s12, 1
    %p51 = scmp.ne.s32.totalorder %s46, %s48
    %p52 = scmp.eq.s32.totalorder %s12, 0
    %p53 = por %p51, %p52
    %p54 = scmp.ne.s32.totalorder %s46, %s48
    %p55 = scmp.eq.s32.totalorder %s17, 1
    %p56 = por %p54, %p55
    %p57 = scmp.ne.s32.totalorder %s48, %s49
    %p58 = scmp.eq.s32.totalorder %s17, 0
    %p59 = por %p57, %p58
    %p60 = scmp.ne.s32.totalorder %s48, %s49
    %p61 = scmp.eq.s32.totalorder %s18, 1
    %p62 = por %p60, %p61
    %p64 = scmp.ne.s32.totalorder %s49, %s63
    %p65 = scmp.eq.s32.totalorder %s18, 0
    %p66 = por %p64, %p65
    %s68 = sadd.s32 %s67, 1
    %p71 = scmp.eq.s32.totalorder %s12, 1
    %p72 = scmp.ne.s32.totalorder %s67, %s69
    %p73 = scmp.eq.s32.totalorder %s12, 0
    %p74 = por %p72, %p73
    %p75 = scmp.ne.s32.totalorder %s67, %s69
    %p76 = scmp.eq.s32.totalorder %s17, 1
    %p77 = por %p75, %p76
    %p78 = scmp.ne.s32.totalorder %s69, %s70
    %p79 = scmp.eq.s32.totalorder %s17, 0
    %p80 = por %p78, %p79
    %p81 = scmp.ne.s32.totalorder %s69, %s70
    %p82 = scmp.eq.s32.totalorder %s18, 1
    %p83 = por %p81, %p82
    %p85 = scmp.ne.s32.totalorder %s70, %s84
    %p86 = scmp.eq.s32.totalorder %s18, 0
    %p87 = por %p85, %p86
    %s88 = ssub.s32 %s12, %s19
    %p89 = scmp.eq.s32.totalorder %s88, 0
    %s91 = sadd.s32 %s90, 1
    %s92 = scalar_select %p89, %s90, %s91
    %p95 = pneg %p89
    %p96 = scmp.eq.s32.totalorder %s12, 1
    %p97 = por %p95, %p96
    %p98 = scmp.ne.s32.totalorder %s90, %s93
    %p99 = scmp.eq.s32.totalorder %s12, 0
    %p100 = por %p98, %p99
    %p101 = scmp.ne.s32.totalorder %s90, %s93
    %p102 = scmp.eq.s32.totalorder %s17, 1
    %p103 = por %p101, %p102
    %p104 = scmp.ne.s32.totalorder %s93, %s94
    %p105 = scmp.eq.s32.totalorder %s17, 0
    %p106 = por %p104, %p105
    %p107 = scmp.ne.s32.totalorder %s93, %s94
    %p108 = scmp.eq.s32.totalorder %s18, 1
    %p109 = por %p107, %p108
    %p111 = scmp.ne.s32.totalorder %s94, %s110
    %p112 = scmp.eq.s32.totalorder %s18, 0
    %p113 = por %p111, %p112
    %s114 = ssub.s32 %s12, %s19
    %p115 = scmp.eq.s32.totalorder %s114, 0
    %s117 = sadd.s32 %s116, 1
    %s118 = scalar_select %p115, %s116, %s117
    %p121 = pneg %p115
    %p122 = scmp.eq.s32.totalorder %s12, 1
    %p123 = por %p121, %p122
    %p124 = scmp.ne.s32.totalorder %s116, %s119
    %p125 = scmp.eq.s32.totalorder %s12, 0
    %p126 = por %p124, %p125
    %p127 = scmp.ne.s32.totalorder %s116, %s119
    %p128 = scmp.eq.s32.totalorder %s17, 1
    %p129 = por %p127, %p128
    %p130 = scmp.ne.s32.totalorder %s119, %s120
    %p131 = scmp.eq.s32.totalorder %s17, 0
    %p132 = por %p130, %p131
    %p133 = scmp.ne.s32.totalorder %s119, %s120
    %p134 = scmp.eq.s32.totalorder %s18, 1
    %p135 = por %p133, %p134
    %p137 = scmp.ne.s32.totalorder %s120, %s136
    %p138 = scmp.eq.s32.totalorder %s18, 0
    %p139 = por %p137, %p138
    %s140 = ssub.s32 %s12, %s19
    %p141 = scmp.eq.s32.totalorder %s140, 0
    %s143 = sadd.s32 %s142, 1
    %s144 = scalar_select %p141, %s142, %s143
    %p147 = pneg %p141
    %p148 = scmp.eq.s32.totalorder %s12, 1
    %p149 = por %p147, %p148
    %p150 = scmp.ne.s32.totalorder %s142, %s145
    %p151 = scmp.eq.s32.totalorder %s12, 0
    %p152 = por %p150, %p151
    %p153 = scmp.ne.s32.totalorder %s142, %s145
    %p154 = scmp.eq.s32.totalorder %s17, 1
    %p155 = por %p153, %p154
    %p156 = scmp.ne.s32.totalorder %s145, %s146
    %p157 = scmp.eq.s32.totalorder %s17, 0
    %p158 = por %p156, %p157
    %p159 = scmp.ne.s32.totalorder %s145, %s146
    %p160 = scmp.eq.s32.totalorder %s18, 1
    %p161 = por %p159, %p160
    %p163 = scmp.ne.s32.totalorder %s146, %s162
    %p164 = scmp.eq.s32.totalorder %s18, 0
    %p165 = por %p163, %p164
    %p166 = scmp.le.s32.totalorder 1, %s12
    %p167 = scmp.lt.s32.totalorder %s12, 3
    %p168 = pnand %p166, %p167
    %p169 = pneg %p168
    // Predicated region
    $region9: #{tpu_custom_call.1} parent=5 // pred_check
      _
    $region10: #{tpu_custom_call.1} parent=5 // pred_check_branch
      %171 = sbr.rel (%p168) target = $region12
    $region11: #{tpu_custom_call.1} parent=5 // pred_region
      %s172 = ssub.s32 %s12, 1
      // Predicated region
      $region13: #{tpu_custom_call.1} parent=11 // pred_check
        %p173 = pneg %p59
      $region14: #{tpu_custom_call.1} parent=11 // pred_check_branch
        %175 = sbr.rel (%p173) target = $region16
      $region15: #{tpu_custom_call.1} parent=11 // pred_region
        _
      $region16: #{tpu_custom_call.1} parent=11 // pred_fallthru
        _
      // Predicated region
      $region17: #{tpu_custom_call.1} parent=11 // pred_check
        %p176 = pneg %p80
      $region18: #{tpu_custom_call.1} parent=11 // pred_check_branch
        %178 = sbr.rel (%p176) target = $region20
      $region19: #{tpu_custom_call.1} parent=11 // pred_region
        _
      $region20: #{tpu_custom_call.1} parent=11 // pred_fallthru
        _
    $region12: #{tpu_custom_call.1} parent=5 // pred_fallthru
      _
    %p179 = scmp.lt.s32.totalorder %s12, 2
    // Predicated region
    $region21: #{tpu_custom_call.1} parent=5 // pred_check
      %p180 = pneg %p179
    $region22: #{tpu_custom_call.1} parent=5 // pred_check_branch
      %182 = sbr.rel (%p180) target = $region24
    $region23: #{tpu_custom_call.1} parent=5 // pred_region
      // Predicated region
      $region25: #{tpu_custom_call.1} parent=23 // pred_check
        %p183 = pneg %p32
      $region26: #{tpu_custom_call.1} parent=23 // pred_check_branch
        %185 = sbr.rel (%p183) target = $region28
      $region27: #{tpu_custom_call.1} parent=23 // pred_region
        %s186 = smul.u32 16, %s12
        %p187 = scmp.lt.s32.totalorder %s186, 31
        %s188 = scalar_select %p187, %s186, 31
        %s189 = smul.addr %s188, 8
        %s190 = scalar_lea.vmem %s0, %s189
        %s191 = smul.u32 16, %s12
      $region28: #{tpu_custom_call.1} parent=23 // pred_fallthru
        _
    $region24: #{tpu_custom_call.1} parent=5 // pred_fallthru
      _
    %p192 = scmp.le.s32.totalorder 1, %s12
    %p193 = scmp.lt.s32.totalorder %s12, 3
    %p194 = pnand %p192, %p193
    %p195 = pneg %p194
    // Predicated region
    $region29: #{tpu_custom_call.1} parent=5 // pred_check
      _
    $region30: #{tpu_custom_call.1} parent=5 // pred_check_branch
      %197 = sbr.rel (%p194) target = $region32
    $region31: #{tpu_custom_call.1} parent=5 // pred_region
      %s198 = ssub.s32 %s12, 1
      %s199 = smul.u32 16, %s17
      %p200 = scmp.lt.s32.totalorder %s199, 31
      %s201 = scalar_select %p200, %s199, 31
      %s202 = smul.addr %s201, 8
      %s203 = scalar_lea.vmem %s0, %s202
      %p204 = pneg %p38
      %p205 = pneg %p35
      %p206 = pneg %p59
      %p207 = pneg %p56
      %p208 = pneg %p80
      %p209 = pneg %p77
      %p210 = pneg %p106
      %p211 = pneg %p103
      %s212 = smul.u32 16, %s17
      %p213 = scmp.lt.s32.totalorder %s212, 31
      %s214 = scalar_select %p213, %s212, 31
      %s215 = smul.addr %s214, 8
      %s216 = scalar_lea.vmem %s3, %s215
      %p217 = pneg %p132
      %p218 = pneg %p129
      %s219 = smul.u32 16, %s17
      %p220 = scmp.lt.s32.totalorder %s219, 31
      %s221 = scalar_select %p220, %s219, 31
      %s222 = smul.addr %s221, 4
      %s223 = scalar_lea.vmem %s4, %s222
      %p224 = pneg %p158
      %p225 = pneg %p155
      %s226 = smul.u32 16, %s17
      %p227 = scmp.lt.s32.totalorder %s226, 31
      %s228 = scalar_select %p227, %s226, 31
      %s229 = smul.addr %s228, 4
      %s230 = scalar_lea.vmem %s5, %s229
      %s231 = smul.u32 16, %s17
      %p232 = scmp.lt.s32.totalorder %s231, 31
      %s233 = scalar_select %p232, %s231, 31
      %s234 = smul.addr %s233, 8
      %s235 = scalar_lea.vmem %s0, %s234
      %s236 = smul.u32 16, %s17
      %s237 = smul.u32 16, %s17
      %p238 = scmp.lt.s32.totalorder %s237, 31
      %s239 = scalar_select %p238, %s237, 31
      %s240 = smul.addr %s239, 8
      %s241 = scalar_lea.vmem %s3, %s240
      %s242 = smul.u32 16, %s17
      %s243 = smul.u32 16, %s17
      %p244 = scmp.lt.s32.totalorder %s243, 31
      %s245 = scalar_select %p244, %s243, 31
      %s246 = smul.addr %s245, 4
      %s247 = scalar_lea.vmem %s4, %s246
      %s248 = smul.u32 16, %s17
      %s249 = smul.u32 16, %s17
      %p250 = scmp.lt.s32.totalorder %s249, 31
      %s251 = scalar_select %p250, %s249, 31
      %s252 = smul.addr %s251, 4
      %s253 = scalar_lea.vmem %s5, %s252
      %s254 = smul.u32 16, %s17
      %v255 = vld [vmem:[%s235] sm:$0xff]
      %v256 = vld [vmem:[%s235 + $0x8] sm:$0xff]
      %v257 = vld [vmem:[%s235 + $0x10] sm:$0xff]
      %v258 = vld [vmem:[%s235 + $0x18] sm:$0xff]
      %v259 = vld [vmem:[%s235 + $0x20] sm:$0xff]
      %v260 = vld [vmem:[%s235 + $0x28] sm:$0xff]
      %v261 = vld [vmem:[%s235 + $0x30] sm:$0xff]
      %v262 = vld [vmem:[%s235 + $0x38] sm:$0xff]
      %v263 = vld [vmem:[%s235 + $0x40] sm:$0xff]
      %v264 = vld [vmem:[%s235 + $0x48] sm:$0xff]
      %v265 = vld [vmem:[%s235 + $0x50] sm:$0xff]
      %v266 = vld [vmem:[%s235 + $0x58] sm:$0xff]
      %v267 = vld [vmem:[%s235 + $0x60] sm:$0xff]
      %v268 = vld [vmem:[%s235 + $0x68] sm:$0xff]
      %v269 = vld [vmem:[%s235 + $0x70] sm:$0xff]
      %v270 = vld [vmem:[%s235 + $0x78] sm:$0xff]
      %v271 = vld [vmem:[%s1] sm:$0xff]
      %v272 = vld [vmem:[%s1 + $0x8] sm:$0xff]
      %v273 = vld [vmem:[%s1 + $0x10] sm:$0xff]
      %v274 = vld [vmem:[%s1 + $0x18] sm:$0xff]
      %v275 = vld [vmem:[%s1 + $0x20] sm:$0xff]
      %v276 = vld [vmem:[%s1 + $0x28] sm:$0xff]
      %v277 = vld [vmem:[%s1 + $0x30] sm:$0xff]
      %v278 = vld [vmem:[%s1 + $0x38] sm:$0xff]
      %v279 = vld [vmem:[%s2] sm:$0x3]
      %v281 = vlaneseq
      %v282 = vshrl.u32 %v281, 7
      %v283 = vsub.s32 0, %v282
      %v284 = vrot.slane %v279, %v283
      %v285 = vlaneseq
      %v286 = vshrl.u32 %v285, 7
      %v287 = vsub.s32 1, %v286
      %v288 = vrot.slane %v279, %v287
      %vm291 = vcmask 261120
      %v293 = vsel %vm291, %v255, 0
      %v296 = vsel %vm291, %v256, 0
      %v299 = vsel %vm291, %v257, 0
      %v302 = vsel %vm291, %v258, 0
      %v305 = vsel %vm291, %v259, 0
      %v308 = vsel %vm291, %v260, 0
      %v311 = vsel %vm291, %v261, 0
      %v314 = vsel %vm291, %v262, 0
      %v317 = vsel %vm291, %v263, 0
      %v320 = vsel %vm291, %v264, 0
      %v323 = vsel %vm291, %v265, 0
      %v326 = vsel %vm291, %v266, 0
      %v329 = vsel %vm291, %v267, 0
      %v332 = vsel %vm291, %v268, 0
      %v335 = vsel %vm291, %v269, 0
      %v338 = vsel %vm291, %v270, 0
      %340 = vmatprep.subr.mxu0 %v272
      %341 = vmatpush1.msra.mxu0 %v271
      %342 = vmatprep.subr.mxu0 %v274
      %343 = vmatpush1.msra.mxu0 %v273
      %344 = vmatprep.subr.mxu0 %v276
      %345 = vmatpush1.msra.mxu0 %v275
      %346 = vmatprep.subr.mxu0 %v278
      %347 = vmatpush1.msra.mxu0 %v277
      %348 = vmatprep.subr.mxu0 0.0
      %349 = vmatpush1.msra.mxu0 0.0
      %350 = vmatprep.subr.mxu0 0.0
      %351 = vmatpush1.msra.mxu0 0.0
      %352 = vmatprep.subr.mxu0 0.0
      %353 = vmatpush1.msra.mxu0 0.0
      %354 = vmatprep.subr.mxu0 0.0
      %355 = vmatpush1.msra.mxu0 0.0
      %356 = vmatprep.subr.mxu0 0.0
      %357 = vmatpush1.msra.mxu0 0.0
      %358 = vmatprep.subr.mxu0 0.0
      %359 = vmatpush1.msra.mxu0 0.0
      %360 = vmatprep.subr.mxu0 0.0
      %361 = vmatpush1.msra.mxu0 0.0
      %362 = vmatprep.subr.mxu0 0.0
      %363 = vmatpush1.msra.mxu0 0.0
      %364 = vmatprep.subr.mxu0 0.0
      %365 = vmatpush1.msra.mxu0 0.0
      %366 = vmatprep.subr.mxu0 0.0
      %367 = vmatpush1.msra.mxu0 0.0
      %368 = vmatprep.subr.mxu0 0.0
      %369 = vmatpush1.msra.mxu0 0.0
      %370 = vmatprep.subr.mxu0 0.0
      %371 = vmatpush1.msra.mxu0 0.0
      %372 = vmatprep.subr.mxu0 0.0
      %373 = vmatpush1.msra.mxu0 0.0
      %374 = vmatprep.subr.mxu0 0.0
      %375 = vmatpush1.msra.mxu0 0.0
      %376 = vmatprep.subr.mxu0 0.0
      %377 = vmatpush1.msra.mxu0 0.0
      %378 = vmatprep.subr.mxu0 0.0
      %379 = vmatpush1.msra.mxu0 0.0
      %380 = vmatprep.subr.mxu0 0.0
      %381 = vmatpush1.msra.mxu0 0.0
      %382 = vmatprep.subr.mxu0 0.0
      %383 = vmatpush1.msra.mxu0 0.0
      %384 = vmatprep.subr.mxu0 0.0
      %385 = vmatpush1.msra.mxu0 0.0
      %386 = vmatprep.subr.mxu0 0.0
      %387 = vmatpush1.msra.mxu0 0.0
      %388 = vmatprep.subr.mxu0 0.0
      %389 = vmatpush1.msra.mxu0 0.0
      %390 = vmatprep.subr.mxu0 0.0
      %391 = vmatpush1.msra.mxu0 0.0
      %392 = vmatprep.subr.mxu0 0.0
      %393 = vmatpush1.msra.mxu0 0.0
      %394 = vmatprep.subr.mxu0 0.0
      %395 = vmatpush1.msra.mxu0 0.0
      %396 = vmatprep.subr.mxu0 0.0
      %397 = vmatpush1.msra.mxu0 0.0
      %398 = vmatprep.subr.mxu0 0.0
      %399 = vmatpush1.msra.mxu0 0.0
      %400 = vmatprep.subr.mxu0 0.0
      %401 = vmatpush1.msra.mxu0 0.0
      %402 = vmatprep.subr.mxu0 0.0
      %403 = vmatpush1.msra.mxu0 0.0
      %404 = vmatprep.mubr.f32.mxu0 0.0
      %405 = vmatmul.mubr.f32.gmra.mrb[0].mxu0 %v293
      %v406 = vpop.f32.mrb[0].mxu0
      %v407 = vadd.f32 %v284, %v406
      %v408 = vpop.f32.mrb[0].mxu0
      %v409 = vadd.f32 %v288, %v408
      %410 = vmatprep.mubr.f32.mxu0 0.0
      %411 = vmatmul.mubr.f32.gmra.mrb[0].mxu0 %v296
      %v412 = vpop.f32.mrb[0].mxu0
      %v413 = vadd.f32 %v284, %v412
      %v414 = vpop.f32.mrb[0].mxu0
      %v415 = vadd.f32 %v288, %v414
      %416 = vmatprep.mubr.f32.mxu0 0.0
      %417 = vmatmul.mubr.f32.gmra.mrb[0].mxu0 %v299
      %v418 = vpop.f32.mrb[0].mxu0
      %v419 = vadd.f32 %v284, %v418
      %v420 = vpop.f32.mrb[0].mxu0
      %v421 = vadd.f32 %v288, %v420
      %422 = vmatprep.mubr.f32.mxu0 0.0
      %423 = vmatmul.mubr.f32.gmra.mrb[0].mxu0 %v302
      %v424 = vpop.f32.mrb[0].mxu0
      %v425 = vadd.f32 %v284, %v424
      %v426 = vpop.f32.mrb[0].mxu0
      %v427 = vadd.f32 %v288, %v426
      %428 = vmatprep.mubr.f32.mxu0 0.0
      %429 = vmatmul.mubr.f32.gmra.mrb[0].mxu0 %v305
      %v430 = vpop.f32.mrb[0].mxu0
      %v431 = vadd.f32 %v284, %v430
      %v432 = vpop.f32.mrb[0].mxu0
      %v433 = vadd.f32 %v288, %v432
      %434 = vmatprep.mubr.f32.mxu0 0.0
      %435 = vmatmul.mubr.f32.gmra.mrb[0].mxu0 %v308
      %v436 = vpop.f32.mrb[0].mxu0
      %v437 = vadd.f32 %v284, %v436
      %v438 = vpop.f32.mrb[0].mxu0
      %v439 = vadd.f32 %v288, %v438
      %440 = vmatprep.mubr.f32.mxu0 0.0
      %441 = vmatmul.mubr.f32.gmra.mrb[0].mxu0 %v311
      %v442 = vpop.f32.mrb[0].mxu0
      %v443 = vadd.f32 %v284, %v442
      %v444 = vpop.f32.mrb[0].mxu0
      %v445 = vadd.f32 %v288, %v444
      %446 = vmatprep.mubr.f32.mxu0 0.0
      %447 = vmatmul.mubr.f32.gmra.mrb[0].mxu0 %v314
      %v448 = vpop.f32.mrb[0].mxu0
      %v449 = vadd.f32 %v284, %v448
      %v450 = vpop.f32.mrb[0].mxu0
      %v451 = vadd.f32 %v288, %v450
      %452 = vmatprep.mubr.f32.mxu0 0.0
      %453 = vmatmul.mubr.f32.gmra.mrb[0].mxu0 %v317
      %v454 = vpop.f32.mrb[0].mxu0
      %v455 = vadd.f32 %v284, %v454
      %v456 = vpop.f32.mrb[0].mxu0
      %v457 = vadd.f32 %v288, %v456
      %458 = vmatprep.mubr.f32.mxu0 0.0
      %459 = vmatmul.mubr.f32.gmra.mrb[0].mxu0 %v320
      %v460 = vpop.f32.mrb[0].mxu0
      %v461 = vadd.f32 %v284, %v460
      %v462 = vpop.f32.mrb[0].mxu0
      %v463 = vadd.f32 %v288, %v462
      %464 = vmatprep.mubr.f32.mxu0 0.0
      %465 = vmatmul.mubr.f32.gmra.mrb[0].mxu0 %v323
      %v466 = vpop.f32.mrb[0].mxu0
      %v467 = vadd.f32 %v284, %v466
      %v468 = vpop.f32.mrb[0].mxu0
      %v469 = vadd.f32 %v288, %v468
      %470 = vmatprep.mubr.f32.mxu0 0.0
      %471 = vmatmul.mubr.f32.gmra.mrb[0].mxu0 %v326
      %v472 = vpop.f32.mrb[0].mxu0
      %v473 = vadd.f32 %v284, %v472
      %v474 = vpop.f32.mrb[0].mxu0
      %v475 = vadd.f32 %v288, %v474
      %476 = vmatprep.mubr.f32.mxu0 0.0
      %477 = vmatmul.mubr.f32.gmra.mrb[0].mxu0 %v329
      %v478 = vpop.f32.mrb[0].mxu0
      %v479 = vadd.f32 %v284, %v478
      %v480 = vpop.f32.mrb[0].mxu0
      %v481 = vadd.f32 %v288, %v480
      %482 = vmatprep.mubr.f32.mxu0 0.0
      %483 = vmatmul.mubr.f32.gmra.mrb[0].mxu0 %v332
      %v484 = vpop.f32.mrb[0].mxu0
      %v485 = vadd.f32 %v284, %v484
      %v486 = vpop.f32.mrb[0].mxu0
      %v487 = vadd.f32 %v288, %v486
      %488 = vmatprep.mubr.f32.mxu0 0.0
      %489 = vmatmul.mubr.f32.gmra.mrb[0].mxu0 %v335
      %v490 = vpop.f32.mrb[0].mxu0
      %v491 = vadd.f32 %v284, %v490
      %v492 = vpop.f32.mrb[0].mxu0
      %v493 = vadd.f32 %v288, %v492
      %494 = vmatprep.mubr.f32.mxu0 0.0
      %495 = vmatmul.mubr.f32.gmra.mrb[0].mxu0 %v338
      %v496 = vpop.f32.mrb[0].mxu0
      %v497 = vadd.f32 %v284, %v496
      %v498 = vpop.f32.mrb[0].mxu0
      %v499 = vadd.f32 %v288, %v498
      %500 = vdwg.mxu0
      %501 = vst.msk [vmem:[%s241] sm:$0xff] %vm291, %v407
      %502 = vst.msk [vmem:[%s241 + $0x8] sm:$0xff] %vm291, %v413
      %503 = vst.msk [vmem:[%s241 + $0x10] sm:$0xff] %vm291, %v419
      %504 = vst.msk [vmem:[%s241 + $0x18] sm:$0xff] %vm291, %v425
      %505 = vst.msk [vmem:[%s241 + $0x20] sm:$0xff] %vm291, %v431
      %506 = vst.msk [vmem:[%s241 + $0x28] sm:$0xff] %vm291, %v437
      %507 = vst.msk [vmem:[%s241 + $0x30] sm:$0xff] %vm291, %v443
      %508 = vst.msk [vmem:[%s241 + $0x38] sm:$0xff] %vm291, %v449
      %509 = vst.msk [vmem:[%s241 + $0x40] sm:$0xff] %vm291, %v455
      %510 = vst.msk [vmem:[%s241 + $0x48] sm:$0xff] %vm291, %v461
      %511 = vst.msk [vmem:[%s241 + $0x50] sm:$0xff] %vm291, %v467
      %512 = vst.msk [vmem:[%s241 + $0x58] sm:$0xff] %vm291, %v473
      %513 = vst.msk [vmem:[%s241 + $0x60] sm:$0xff] %vm291, %v479
      %514 = vst.msk [vmem:[%s241 + $0x68] sm:$0xff] %vm291, %v485
      %515 = vst.msk [vmem:[%s241 + $0x70] sm:$0xff] %vm291, %v491
      %516 = vst.msk [vmem:[%s241 + $0x78] sm:$0xff] %vm291, %v497
      %v517 = vpack.c.bf16 %v413, %v407
      %v518 = vpack.c.bf16 %v425, %v419
      %v519 = vpack.c.bf16 %v437, %v431
      %v520 = vpack.c.bf16 %v449, %v443
      %v521 = vpack.c.bf16 %v461, %v455
      %v522 = vpack.c.bf16 %v473, %v467
      %v523 = vpack.c.bf16 %v485, %v479
      %v524 = vpack.c.bf16 %v497, %v491
      %v533 = vunpack.c.l.b16 %v517
      %v534 = vunpack.c.h.b16 %v517
      %v535 = vunpack.c.l.b16 %v518
      %v536 = vunpack.c.h.b16 %v518
      %v537 = vunpack.c.l.b16 %v519
      %v538 = vunpack.c.h.b16 %v519
      %v539 = vunpack.c.l.b16 %v520
      %v540 = vunpack.c.h.b16 %v520
      %v541 = vunpack.c.l.b16 %v521
      %v542 = vunpack.c.h.b16 %v521
      %v543 = vunpack.c.l.b16 %v522
      %v544 = vunpack.c.h.b16 %v522
      %v545 = vunpack.c.l.b16 %v523
      %v546 = vunpack.c.h.b16 %v523
      %v547 = vunpack.c.l.b16 %v524
      %v548 = vunpack.c.h.b16 %v524
      %v549 = vpack.c.b16 %v533, %v533
      %v550 = vpack.c.b16 %v534, %v534
      %v551 = vpack.c.b16 %v535, %v535
      %v552 = vpack.c.b16 %v536, %v536
      %v553 = vpack.c.b16 %v537, %v537
      %v554 = vpack.c.b16 %v538, %v538
      %v555 = vpack.c.b16 %v539, %v539
      %v556 = vpack.c.b16 %v540, %v540
      %v557 = vpack.c.b16 %v541, %v541
      %v558 = vpack.c.b16 %v542, %v542
      %v559 = vpack.c.b16 %v543, %v543
      %v560 = vpack.c.b16 %v544, %v544
      %v561 = vpack.c.b16 %v545, %v545
      %v562 = vpack.c.b16 %v546, %v546
      %v563 = vpack.c.b16 %v547, %v547
      %v564 = vpack.c.b16 %v548, %v548
      %565 = vrot.lane.b32.xlu0 %v549, 96
      %v566 = vpop.permute.xlu0 %565
      %567 = vrot.lane.b32.xlu0 %v550, 96
      %v568 = vpop.permute.xlu0 %567
      %569 = vrot.lane.b32.xlu0 %v551, 96
      %v570 = vpop.permute.xlu0 %569
      %571 = vrot.lane.b32.xlu0 %v552, 96
      %v572 = vpop.permute.xlu0 %571
      %573 = vrot.lane.b32.xlu0 %v553, 96
      %v574 = vpop.permute.xlu0 %573
      %575 = vrot.lane.b32.xlu0 %v554, 96
      %v576 = vpop.permute.xlu0 %575
      %577 = vrot.lane.b32.xlu0 %v555, 96
      %v578 = vpop.permute.xlu0 %577
      %579 = vrot.lane.b32.xlu0 %v556, 96
      %v580 = vpop.permute.xlu0 %579
      %581 = vrot.lane.b32.xlu0 %v557, 96
      %v582 = vpop.permute.xlu0 %581
      %583 = vrot.lane.b32.xlu0 %v558, 96
      %v584 = vpop.permute.xlu0 %583
      %585 = vrot.lane.b32.xlu0 %v559, 96
      %v586 = vpop.permute.xlu0 %585
      %587 = vrot.lane.b32.xlu0 %v560, 96
      %v588 = vpop.permute.xlu0 %587
      %589 = vrot.lane.b32.xlu0 %v561, 96
      %v590 = vpop.permute.xlu0 %589
      %591 = vrot.lane.b32.xlu0 %v562, 96
      %v592 = vpop.permute.xlu0 %591
      %593 = vrot.lane.b32.xlu0 %v563, 96
      %v594 = vpop.permute.xlu0 %593
      %595 = vrot.lane.b32.xlu0 %v564, 96
      %v596 = vpop.permute.xlu0 %595
      %vm613 = vcmask 519168
      %614 = vst.msk [vmem:[%s247] sm:$0xf] %vm613, %v566
      %615 = vst.msk [vmem:[%s247 + $0x4] sm:$0xf] %vm613, %v568
      %616 = vst.msk [vmem:[%s247 + $0x8] sm:$0xf] %vm613, %v570
      %617 = vst.msk [vmem:[%s247 + $0xc] sm:$0xf] %vm613, %v572
      %618 = vst.msk [vmem:[%s247 + $0x10] sm:$0xf] %vm613, %v574
      %619 = vst.msk [vmem:[%s247 + $0x14] sm:$0xf] %vm613, %v576
      %620 = vst.msk [vmem:[%s247 + $0x18] sm:$0xf] %vm613, %v578
      %621 = vst.msk [vmem:[%s247 + $0x1c] sm:$0xf] %vm613, %v580
      %622 = vst.msk [vmem:[%s247 + $0x20] sm:$0xf] %vm613, %v582
      %623 = vst.msk [vmem:[%s247 + $0x24] sm:$0xf] %vm613, %v584
      %624 = vst.msk [vmem:[%s247 + $0x28] sm:$0xf] %vm613, %v586
      %625 = vst.msk [vmem:[%s247 + $0x2c] sm:$0xf] %vm613, %v588
      %626 = vst.msk [vmem:[%s247 + $0x30] sm:$0xf] %vm613, %v590
      %627 = vst.msk [vmem:[%s247 + $0x34] sm:$0xf] %vm613, %v592
      %628 = vst.msk [vmem:[%s247 + $0x38] sm:$0xf] %vm613, %v594
      %629 = vst.msk [vmem:[%s247 + $0x3c] sm:$0xf] %vm613, %v596
      %v630 = vpack.c.bf16 %v415, %v409
      %v631 = vpack.c.bf16 %v427, %v421
      %v632 = vpack.c.bf16 %v439, %v433
      %v633 = vpack.c.bf16 %v451, %v445
      %v634 = vpack.c.bf16 %v463, %v457
      %v635 = vpack.c.bf16 %v475, %v469
      %v636 = vpack.c.bf16 %v487, %v481
      %v637 = vpack.c.bf16 %v499, %v493
      %v646 = vunpack.c.l.b16 %v630
      %v647 = vunpack.c.h.b16 %v630
      %v648 = vunpack.c.l.b16 %v631
      %v649 = vunpack.c.h.b16 %v631
      %v650 = vunpack.c.l.b16 %v632
      %v651 = vunpack.c.h.b16 %v632
      %v652 = vunpack.c.l.b16 %v633
      %v653 = vunpack.c.h.b16 %v633
      %v654 = vunpack.c.l.b16 %v634
      %v655 = vunpack.c.h.b16 %v634
      %v656 = vunpack.c.l.b16 %v635
      %v657 = vunpack.c.h.b16 %v635
      %v658 = vunpack.c.l.b16 %v636
      %v659 = vunpack.c.h.b16 %v636
      %v660 = vunpack.c.l.b16 %v637
      %v661 = vunpack.c.h.b16 %v637
      %v662 = vpack.c.b16 %v646, %v533
      %v663 = vpack.c.b16 %v647, %v534
      %v664 = vpack.c.b16 %v648, %v535
      %v665 = vpack.c.b16 %v649, %v536
      %v666 = vpack.c.b16 %v650, %v537
      %v667 = vpack.c.b16 %v651, %v538
      %v668 = vpack.c.b16 %v652, %v539
      %v669 = vpack.c.b16 %v653, %v540
      %v670 = vpack.c.b16 %v654, %v541
      %v671 = vpack.c.b16 %v655, %v542
      %v672 = vpack.c.b16 %v656, %v543
      %v673 = vpack.c.b16 %v657, %v544
      %v674 = vpack.c.b16 %v658, %v545
      %v675 = vpack.c.b16 %v659, %v546
      %v676 = vpack.c.b16 %v660, %v547
      %v677 = vpack.c.b16 %v661, %v548
      %678 = vrot.lane.b32.xlu0 %v662, 32
      %v679 = vpop.permute.xlu0 %678
      %680 = vrot.lane.b32.xlu0 %v663, 32
      %v681 = vpop.permute.xlu0 %680
      %682 = vrot.lane.b32.xlu0 %v664, 32
      %v683 = vpop.permute.xlu0 %682
      %684 = vrot.lane.b32.xlu0 %v665, 32
      %v685 = vpop.permute.xlu0 %684
      %686 = vrot.lane.b32.xlu0 %v666, 32
      %v687 = vpop.permute.xlu0 %686
      %688 = vrot.lane.b32.xlu0 %v667, 32
      %v689 = vpop.permute.xlu0 %688
      %690 = vrot.lane.b32.xlu0 %v668, 32
      %v691 = vpop.permute.xlu0 %690
      %692 = vrot.lane.b32.xlu0 %v669, 32
      %v693 = vpop.permute.xlu0 %692
      %694 = vrot.lane.b32.xlu0 %v670, 32
      %v695 = vpop.permute.xlu0 %694
      %696 = vrot.lane.b32.xlu0 %v671, 32
      %v697 = vpop.permute.xlu0 %696
      %698 = vrot.lane.b32.xlu0 %v672, 32
      %v699 = vpop.permute.xlu0 %698
      %700 = vrot.lane.b32.xlu0 %v673, 32
      %v701 = vpop.permute.xlu0 %700
      %702 = vrot.lane.b32.xlu0 %v674, 32
      %v703 = vpop.permute.xlu0 %702
      %704 = vrot.lane.b32.xlu0 %v675, 32
      %v705 = vpop.permute.xlu0 %704
      %706 = vrot.lane.b32.xlu0 %v676, 32
      %v707 = vpop.permute.xlu0 %706
      %708 = vrot.lane.b32.xlu0 %v677, 32
      %v709 = vpop.permute.xlu0 %708
      %v710 = vrot.slane %v679, 4
      %v711 = vrot.slane %v681, 4
      %v712 = vrot.slane %v683, 4
      %v713 = vrot.slane %v685, 4
      %v714 = vrot.slane %v687, 4
      %v715 = vrot.slane %v689, 4
      %v716 = vrot.slane %v691, 4
      %v717 = vrot.slane %v693, 4
      %v718 = vrot.slane %v695, 4
      %v719 = vrot.slane %v697, 4
      %v720 = vrot.slane %v699, 4
      %v721 = vrot.slane %v701, 4
      %v722 = vrot.slane %v703, 4
      %v723 = vrot.slane %v705, 4
      %v724 = vrot.slane %v707, 4
      %v725 = vrot.slane %v709, 4
      %vm726 = vcmask 261120
      %v727 = vsel %vm726, %v679, %v710
      %v728 = vsel %vm726, %v681, %v711
      %v729 = vsel %vm726, %v683, %v712
      %v730 = vsel %vm726, %v685, %v713
      %v731 = vsel %vm726, %v687, %v714
      %v732 = vsel %vm726, %v689, %v715
      %v733 = vsel %vm726, %v691, %v716
      %v734 = vsel %vm726, %v693, %v717
      %v735 = vsel %vm726, %v695, %v718
      %v736 = vsel %vm726, %v697, %v719
      %v737 = vsel %vm726, %v699, %v720
      %v738 = vsel %vm726, %v701, %v721
      %v739 = vsel %vm726, %v703, %v722
      %v740 = vsel %vm726, %v705, %v723
      %v741 = vsel %vm726, %v707, %v724
      %v742 = vsel %vm726, %v709, %v725
      %759 = vst.msk [vmem:[%s253] sm:$0xf] %vm613, %v727
      %760 = vst.msk [vmem:[%s253 + $0x4] sm:$0xf] %vm613, %v728
      %761 = vst.msk [vmem:[%s253 + $0x8] sm:$0xf] %vm613, %v729
      %762 = vst.msk [vmem:[%s253 + $0xc] sm:$0xf] %vm613, %v730
      %763 = vst.msk [vmem:[%s253 + $0x10] sm:$0xf] %vm613, %v731
      %764 = vst.msk [vmem:[%s253 + $0x14] sm:$0xf] %vm613, %v732
      %765 = vst.msk [vmem:[%s253 + $0x18] sm:$0xf] %vm613, %v733
      %766 = vst.msk [vmem:[%s253 + $0x1c] sm:$0xf] %vm613, %v734
      %767 = vst.msk [vmem:[%s253 + $0x20] sm:$0xf] %vm613, %v735
      %768 = vst.msk [vmem:[%s253 + $0x24] sm:$0xf] %vm613, %v736
      %769 = vst.msk [vmem:[%s253 + $0x28] sm:$0xf] %vm613, %v737
      %770 = vst.msk [vmem:[%s253 + $0x2c] sm:$0xf] %vm613, %v738
      %771 = vst.msk [vmem:[%s253 + $0x30] sm:$0xf] %vm613, %v739
      %772 = vst.msk [vmem:[%s253 + $0x34] sm:$0xf] %vm613, %v740
      %773 = vst.msk [vmem:[%s253 + $0x38] sm:$0xf] %vm613, %v741
      %774 = vst.msk [vmem:[%s253 + $0x3c] sm:$0xf] %vm613, %v742
      %s775 = smul.u32 16, %s17
      %p776 = scmp.lt.s32.totalorder %s775, 31
      %s777 = scalar_select %p776, %s775, 31
      %s778 = smul.addr %s777, 8
      %s779 = scalar_lea.vmem %s3, %s778
      %s780 = smul.u32 16, %s17
      %p781 = scmp.lt.s32.totalorder %s780, 31
      %s782 = scalar_select %p781, %s780, 31
      %s783 = smul.addr %s782, 4
      %s784 = scalar_lea.vmem %s4, %s783
      %s785 = smul.u32 16, %s17
      %p786 = scmp.lt.s32.totalorder %s785, 31
      %s787 = scalar_select %p786, %s785, 31
      %s788 = smul.addr %s787, 4
      %s789 = scalar_lea.vmem %s5, %s788
      // Predicated region
      $region33: #{tpu_custom_call.1} parent=31 // pred_check
        %p790 = pneg %p103
      $region34: #{tpu_custom_call.1} parent=31 // pred_check_branch
        %792 = sbr.rel (%p790) target = $region36
      $region35: #{tpu_custom_call.1} parent=31 // pred_region
        %s793 = smul.u32 16, %s17
      $region36: #{tpu_custom_call.1} parent=31 // pred_fallthru
        _
      // Predicated region
      $region37: #{tpu_custom_call.1} parent=31 // pred_check
        %p794 = pneg %p129
      $region38: #{tpu_custom_call.1} parent=31 // pred_check_branch
        %796 = sbr.rel (%p794) target = $region40
      $region39: #{tpu_custom_call.1} parent=31 // pred_region
        %s797 = smul.u32 16, %s17
      $region40: #{tpu_custom_call.1} parent=31 // pred_fallthru
        _
      // Predicated region
      $region41: #{tpu_custom_call.1} parent=31 // pred_check
        %p798 = pneg %p155
      $region42: #{tpu_custom_call.1} parent=31 // pred_check_branch
        %800 = sbr.rel (%p798) target = $region44
      $region43: #{tpu_custom_call.1} parent=31 // pred_region
        %s801 = smul.u32 16, %s17
      $region44: #{tpu_custom_call.1} parent=31 // pred_fallthru
        _
    $region32: #{tpu_custom_call.1} parent=5 // pred_fallthru
      _
    %p802 = scmp.le.s32.totalorder 2, %s12
    // Predicated region
    $region45: #{tpu_custom_call.1} parent=5 // pred_check
      %p803 = pneg %p802
    $region46: #{tpu_custom_call.1} parent=5 // pred_check_branch
      %805 = sbr.rel (%p803) target = $region48
    $region47: #{tpu_custom_call.1} parent=5 // pred_region
      %s806 = ssub.s32 %s12, 2
      // Predicated region
      $region49: #{tpu_custom_call.1} parent=47 // pred_check
        %p807 = pneg %p109
      $region50: #{tpu_custom_call.1} parent=47 // pred_check_branch
        %809 = sbr.rel (%p807) target = $region52
      $region51: #{tpu_custom_call.1} parent=47 // pred_region
        %s810 = smul.u32 16, %s18
        %p811 = scmp.lt.s32.totalorder %s810, 31
        %s812 = scalar_select %p811, %s810, 31
        %s813 = smul.addr %s812, 8
        %s814 = scalar_lea.vmem %s3, %s813
      $region52: #{tpu_custom_call.1} parent=47 // pred_fallthru
        _
      // Predicated region
      $region53: #{tpu_custom_call.1} parent=47 // pred_check
        %p815 = pneg %p135
      $region54: #{tpu_custom_call.1} parent=47 // pred_check_branch
        %817 = sbr.rel (%p815) target = $region56
      $region55: #{tpu_custom_call.1} parent=47 // pred_region
        %s818 = smul.u32 16, %s18
        %p819 = scmp.lt.s32.totalorder %s818, 31
        %s820 = scalar_select %p819, %s818, 31
        %s821 = smul.addr %s820, 4
        %s822 = scalar_lea.vmem %s4, %s821
      $region56: #{tpu_custom_call.1} parent=47 // pred_fallthru
        _
      // Predicated region
      $region57: #{tpu_custom_call.1} parent=47 // pred_check
        %p823 = pneg %p161
      $region58: #{tpu_custom_call.1} parent=47 // pred_check_branch
        %825 = sbr.rel (%p823) target = $region60
      $region59: #{tpu_custom_call.1} parent=47 // pred_region
        %s826 = smul.u32 16, %s18
        %p827 = scmp.lt.s32.totalorder %s826, 31
        %s828 = scalar_select %p827, %s826, 31
        %s829 = smul.addr %s828, 4
        %s830 = scalar_lea.vmem %s5, %s829
      $region60: #{tpu_custom_call.1} parent=47 // pred_fallthru
        _
    $region48: #{tpu_custom_call.1} parent=5 // pred_fallthru
      _
  $region6: #{tpu_custom_call.1} parent=0 // loop_footer
    %s16 = sadd.s32 1, %s12
  $region7: #{tpu_custom_call.1} parent=0 // loop_footer_branch
    %11 = sbr.rel target = $region3
  $region8: #{tpu_custom_call.1} parent=0 // loop_exit
    _

</llo_original>
